<compile_context>
chip_gen: v7x
topology: tpu7x:2x2x1
jax: 0.10.0
libtpu: 0.0.40
codegen_flags: <defaults>
</compile_context>

<pallas_src>
import functools

import jax
import jax.numpy as jnp
import numpy as np
from jax.experimental import pallas as pl
from jax.experimental.pallas import tpu as pltpu

EPS = 1e-06
SEGMENTS = np.array(
    [0.0, 0.0015625, 0.0125, 0.5, 1.0, 2.0, 64.0, 1024.0, 24576.0],
    dtype=np.float32,
)
# lut[i] = 1 / sqrt(segments[i] + 1e-4)   (matches _generate_inv_sqrt_lut)
LUT = (1.0 / np.sqrt(SEGMENTS + 1e-4)).astype(np.float32)
NSEG = SEGMENTS.shape[0]

# Constant-folded piecewise-linear parameters (become immediates in the kernel).
_LOWERS = [float(SEGMENTS[i]) for i in range(NSEG - 1)]
_LUT_L = [float(LUT[i]) for i in range(NSEG - 1)]
_SLOPES = [
    float((LUT[i + 1] - LUT[i]) / (SEGMENTS[i + 1] - SEGMENTS[i] + np.float32(EPS)))
    for i in range(NSEG - 1)
]
_SAT_SEG = float(SEGMENTS[-1])
_SAT_LUT = float(LUT[-1])


def _round_up(n, m):
    return ((n + m - 1) // m) * m


def _cdiv(a, b):
    return (a + b - 1) // b


# --------------------------------------------------------------------------
# Kernel
# --------------------------------------------------------------------------
def _seg_lut_rmsnorm_kernel(x_ref, w_ref, o_ref, *, inv_d, d_valid, mask_lanes):
    """x_ref: (TB, D) f32, w_ref: (1, D) f32, o_ref: (TB, D) f32."""
    x = x_ref[...]                                              # (TB, D)

    if mask_lanes:
        # D is not a multiple of 128: defensively zero the (layout) tail lanes
        # before the row reduction so they cannot perturb mean_sq.
        lane = jax.lax.broadcasted_iota(jnp.int32, x.shape, dimension=1)
        xsq = jnp.where(lane < d_valid, x * x, jnp.float32(0.0))
    else:
        xsq = x * x

    # inv_d = 1/D so the row sum becomes the mean over the real feature dim.
    mean_sq = jnp.sum(xsq, axis=-1, keepdims=True) * inv_d      # (TB, 1)

    # Low-to-high cascade: intervals are contiguous, so later segments (and
    # the final saturate) override earlier ones — only the lower-bound compare
    # is needed.  val = lut_l + (mean_sq - lower) * slope (slope precomputed;
    # numerically equivalent to the reference convex combination to ~1 ulp).
    inv_rms = jnp.zeros_like(mean_sq)
    for i in range(NSEG - 1):
        val = _LUT_L[i] + (mean_sq - _LOWERS[i]) * _SLOPES[i]
        inv_rms = jnp.where(mean_sq >= _LOWERS[i], val, inv_rms)
    inv_rms = jnp.where(mean_sq >= _SAT_SEG, _SAT_LUT, inv_rms)

    o_ref[...] = x * inv_rms * w_ref[...]


# --------------------------------------------------------------------------
# Generation-aware configuration
# --------------------------------------------------------------------------
def _choose_config(B, D):
    """Pick (block_b, input buffer depth, scoped-VMEM limit) per TPU generation."""
    kind = ""
    try:
        kind = jax.devices()[0].device_kind.lower()
    except Exception:
        pass
    is_v7 = "7" in kind   # v7x: 2 TensorCores/chip, 64 MiB physical VMEM, ~3.2 TB/s HBM

    d_lane = max(128, _round_up(D, 128))  # VMEM layout pads lanes to 128 anyway

    if is_v7:
        tile_target = 6 * 1024 * 1024      # ~6 MiB x-tile (steps ~1 us -> amortize 0.35 us)
        vmem_limit = 40 * 1024 * 1024      # 64 MiB physical -> leave Mosaic headroom
        buffers = 3                        # deeper input buffering to keep HBM queue full
    else:
        tile_target = 8 * 1024 * 1024      # v5e/v6e: 128 MiB physical VMEM
        vmem_limit = 64 * 1024 * 1024
        buffers = 2

    rows = tile_target // (4 * d_lane)
    rows = max(8, (rows // 8) * 8)
    block_b = min(rows, _round_up(B, 8))
    grid_b = _cdiv(B, block_b)

    if is_v7 and B > 8:
        # Give both TensorCores work; prefer an even step count for balance.
        if grid_b == 1 and block_b >= 16:
            block_b = max(8, _round_up(_cdiv(B, 2), 8))
            grid_b = _cdiv(B, block_b)
        if grid_b > 1 and grid_b % 2 == 1:
            for g_try in (grid_b + 1, grid_b + 3):
                cand = max(8, _round_up(_cdiv(B, g_try), 8))
                if _cdiv(B, cand) % 2 == 0:
                    block_b = cand
                    break

    return block_b, buffers, vmem_limit


def _make_x_spec(block_b, D, buffers):
    idx = lambda i: (i, 0)
    if buffers > 2:
        try:
            return pl.BlockSpec((block_b, D), idx, pipeline_mode=pl.Buffered(buffers))
        except TypeError:
            pass  # older jax without pipeline_mode: fall back to default 2-deep
    return pl.BlockSpec((block_b, D), idx)


# --------------------------------------------------------------------------
# pallas_call wrapper
# --------------------------------------------------------------------------
@functools.partial(
    jax.jit, static_argnames=("block_b", "buffers", "vmem_limit_bytes", "donate_x")
)
def _run(x2d, w2, *, block_b, buffers, vmem_limit_bytes, donate_x):
    B, D = x2d.shape
    grid_b = _cdiv(B, block_b)

    kernel = functools.partial(
        _seg_lut_rmsnorm_kernel,
        inv_d=np.float32(1.0 / D),
        d_valid=D,
        mask_lanes=(D % 128 != 0),
    )

    kwargs = {}
    if donate_x:
        kwargs["input_output_aliases"] = {0: 0}   # reuse x's HBM buffer (caller donates)

    return pl.pallas_call(
        kernel,
        out_shape=jax.ShapeDtypeStruct((B, D), jnp.float32),
        grid=(grid_b,),
        in_specs=[
            _make_x_spec(block_b, D, buffers),              # x tile (ragged last block OK)
            pl.BlockSpec((1, D), lambda i: (0, 0)),         # weight, resident
        ],
        out_specs=pl.BlockSpec((block_b, D), lambda i: (i, 0)),
        compiler_params=pltpu.CompilerParams(
            dimension_semantics=("parallel",),
            vmem_limit_bytes=int(vmem_limit_bytes),
        ),
        cost_estimate=pl.CostEstimate(
            flops=4 * B * D,
            transcendentals=0,
            bytes_accessed=(2 * B * D + D) * 4,
        ),
        **kwargs,
    )(x2d, w2)


def segmented_lut_rmsnorm(x, weight, *, block_b=None, donate_x=False):
    """x: (B, D) or (B, 1, D) f32, weight: (D,) f32  ->  same shape as x."""
    orig_shape = x.shape
    if x.ndim == 3:
        x = x.reshape(-1, x.shape[-1])
    B, D = x.shape

    auto_block, buffers, vmem_limit = _choose_config(B, D)
    if block_b is None:
        block_b = auto_block
    else:
        if block_b < 8 or block_b % 8 != 0:
            raise ValueError(f"block_b must be a positive multiple of 8, got {block_b}")

    out = _run(
        x,
        weight.reshape(1, D),
        block_b=int(block_b),
        buffers=int(buffers),
        vmem_limit_bytes=int(vmem_limit),
        donate_x=bool(donate_x),
    )
    return out.reshape(orig_shape)


# --------------------------------------------------------------------------
# Pure-JAX reference mirroring the PyTorch forward (ratio formulation)
# --------------------------------------------------------------------------
def _reference(x, weight):
    mean_sq = jnp.mean(x * x, axis=-1, keepdims=True)
    out = jnp.zeros_like(mean_sq)
    for i in range(NSEG - 1):
        lower, upper = SEGMENTS[i], SEGMENTS[i + 1]
        mask = (mean_sq >= lower) & (mean_sq < upper)
        ratio = (mean_sq - lower) / (upper - lower + EPS)
        val = LUT[i] * (1.0 - ratio) + LUT[i + 1] * ratio
        out = jnp.where(mask, val, out)
    out = jnp.where(mean_sq >= SEGMENTS[-1], LUT[-1], out)
    return x * out * weight[None, :]


if __name__ == "__main__":
    key = jax.random.PRNGKey(0)
    kx, kw = jax.random.split(key)

    # B deliberately NOT a multiple of 8 -> exercises the ragged final block.
    B, D = 10, 256
    x = jax.random.normal(kx, (B, D), dtype=jnp.float32)
    # Different per-row scales so several LUT segments (and the saturate) are hit.
    row_scale = jnp.array(
        [0.01, 0.05, 0.1, 0.5, 1.0, 2.0, 8.0, 40.0, 200.0, 800.0],
        dtype=jnp.float32,
    ).reshape(B, 1)
    x = x * row_scale
    weight = jax.random.normal(kw, (D,), dtype=jnp.float32)

    out = jax.block_until_ready(segmented_lut_rmsnorm(x, weight))
    ref = _reference(x, weight)
    np.testing.assert_allclose(np.asarray(out), np.asarray(ref), rtol=2e-5, atol=2e-5)

    # (B, 1, D) input path.
    x3 = x[:4].reshape(4, 1, D)
    out3 = jax.block_until_ready(segmented_lut_rmsnorm(x3, weight))
    ref3 = _reference(x3.reshape(4, D), weight).reshape(4, 1, D)
    np.testing.assert_allclose(np.asarray(out3), np.asarray(ref3), rtol=2e-5, atol=2e-5)

    print("KERNEL_OK")
</pallas_src>

<mosaic_0001>
module attributes {stable_mosaic.version = 11 : i64} {
  func.func @_seg_lut_rmsnorm_kernel(%arg0: i32, %arg1: memref<16x256xf32, #tpu.memory_space<vmem>>, %arg2: memref<1x256xf32, #tpu.memory_space<vmem>>, %arg3: memref<16x256xf32, #tpu.memory_space<vmem>>) attributes {dimension_semantics = [#tpu.dimension_semantics<parallel>], iteration_bounds = array<i64: 1>, scalar_prefetch = 0 : i64, scratch_operands = 0 : i64, tpu.core_type = #tpu.core_type<tc>, window_params = [{transform_indices = @transform_0, window_bounds = array<i64: 16, 256>}, {pipeline_mode = #tpu.pipeline_mode<synchronous>, transform_indices = @transform_1, window_bounds = array<i64: 1, 256>}, {transform_indices = @transform_2, window_bounds = array<i64: 16, 256>}]} {
    %c0 = arith.constant 0 : index
    %c0_0 = arith.constant 0 : index
    %0 = vector.load %arg1[%c0, %c0_0] : memref<16x256xf32, #tpu.memory_space<vmem>>, vector<16x256xf32>
    %1 = arith.mulf %0, %0 : vector<16x256xf32>
    %cst = arith.constant dense<0.000000e+00> : vector<16xf32>
    %2 = vector.multi_reduction <add>, %1, %cst [1] : vector<16x256xf32> to vector<16xf32>
    %3 = vector.shape_cast %2 : vector<16xf32> to vector<16x1xf32>
    %cst_1 = arith.constant 3.906250e-03 : f32
    %4 = vector.broadcast %cst_1 : f32 to vector<16x1xf32>
    %5 = arith.mulf %3, %4 : vector<16x1xf32>
    %cst_2 = arith.constant 0.000000e+00 : f32
    %6 = vector.broadcast %cst_2 : f32 to vector<16x1xf32>
    %cst_3 = arith.constant 0.000000e+00 : f32
    %7 = vector.broadcast %cst_3 : f32 to vector<16x1xf32>
    %8 = arith.subf %5, %7 : vector<16x1xf32>
    %cst_4 = arith.constant -48272.7383 : f32
    %9 = vector.broadcast %cst_4 : f32 to vector<16x1xf32>
    %10 = arith.mulf %8, %9 : vector<16x1xf32>
    %cst_5 = arith.constant 1.000000e+02 : f32
    %11 = vector.broadcast %cst_5 : f32 to vector<16x1xf32>
    %12 = arith.addf %11, %10 : vector<16x1xf32>
    %cst_6 = arith.constant 0.000000e+00 : f32
    %13 = vector.broadcast %cst_6 : f32 to vector<16x1xf32>
    %14 = arith.cmpf oge, %5, %13 : vector<16x1xf32>
    %15 = arith.select %14, %12, %6 : vector<16x1xi1>, vector<16x1xf32>
    %cst_7 = arith.constant 1.562500e-03 : f32
    %16 = vector.broadcast %cst_7 : f32 to vector<16x1xf32>
    %17 = arith.subf %5, %16 : vector<16x1xf32>
    %cst_8 = arith.constant -1427.69727 : f32
    %18 = vector.broadcast %cst_8 : f32 to vector<16x1xf32>
    %19 = arith.mulf %17, %18 : vector<16x1xf32>
    %cst_9 = arith.constant 24.5255737 : f32
    %20 = vector.broadcast %cst_9 : f32 to vector<16x1xf32>
    %21 = arith.addf %20, %19 : vector<16x1xf32>
    %cst_10 = arith.constant 1.562500e-03 : f32
    %22 = vector.broadcast %cst_10 : f32 to vector<16x1xf32>
    %23 = arith.cmpf oge, %5, %22 : vector<16x1xf32>
    %24 = arith.select %23, %21, %15 : vector<16x1xi1>, vector<16x1xf32>
    %cst_11 = arith.constant 1.250000e-02 : f32
    %25 = vector.broadcast %cst_11 : f32 to vector<16x1xf32>
    %26 = arith.subf %5, %25 : vector<16x1xf32>
    %cst_12 = arith.constant -15.373579 : f32
    %27 = vector.broadcast %cst_12 : f32 to vector<16x1xf32>
    %28 = arith.mulf %26, %27 : vector<16x1xf32>
    %cst_13 = arith.constant 8.90870761 : f32
    %29 = vector.broadcast %cst_13 : f32 to vector<16x1xf32>
    %30 = arith.addf %29, %28 : vector<16x1xf32>
    %cst_14 = arith.constant 1.250000e-02 : f32
    %31 = vector.broadcast %cst_14 : f32 to vector<16x1xf32>
    %32 = arith.cmpf oge, %5, %31 : vector<16x1xf32>
    %33 = arith.select %32, %30, %24 : vector<16x1xi1>, vector<16x1xf32>
    %cst_15 = arith.constant 5.000000e-01 : f32
    %34 = vector.broadcast %cst_15 : f32 to vector<16x1xf32>
    %35 = arith.subf %5, %34 : vector<16x1xf32>
    %cst_16 = arith.constant -0.82824254 : f32
    %36 = vector.broadcast %cst_16 : f32 to vector<16x1xf32>
    %37 = arith.mulf %35, %36 : vector<16x1xf32>
    %cst_17 = arith.constant 1.41407216 : f32
    %38 = vector.broadcast %cst_17 : f32 to vector<16x1xf32>
    %39 = arith.addf %38, %37 : vector<16x1xf32>
    %cst_18 = arith.constant 5.000000e-01 : f32
    %40 = vector.broadcast %cst_18 : f32 to vector<16x1xf32>
    %41 = arith.cmpf oge, %5, %40 : vector<16x1xf32>
    %42 = arith.select %41, %39, %33 : vector<16x1xi1>, vector<16x1xf32>
    %cst_19 = arith.constant 1.000000e+00 : f32
    %43 = vector.broadcast %cst_19 : f32 to vector<16x1xf32>
    %44 = arith.subf %5, %43 : vector<16x1xf32>
    %cst_20 = arith.constant -0.292860657 : f32
    %45 = vector.broadcast %cst_20 : f32 to vector<16x1xf32>
    %46 = arith.mulf %44, %45 : vector<16x1xf32>
    %cst_21 = arith.constant 0.999950051 : f32
    %47 = vector.broadcast %cst_21 : f32 to vector<16x1xf32>
    %48 = arith.addf %47, %46 : vector<16x1xf32>
    %cst_22 = arith.constant 1.000000e+00 : f32
    %49 = vector.broadcast %cst_22 : f32 to vector<16x1xf32>
    %50 = arith.cmpf oge, %5, %49 : vector<16x1xf32>
    %51 = arith.select %50, %48, %42 : vector<16x1xi1>, vector<16x1xf32>
    %cst_23 = arith.constant 2.000000e+00 : f32
    %52 = vector.broadcast %cst_23 : f32 to vector<16x1xf32>
    %53 = arith.subf %5, %52 : vector<16x1xf32>
    %cst_24 = arith.constant -0.00938853528 : f32
    %54 = vector.broadcast %cst_24 : f32 to vector<16x1xf32>
    %55 = arith.mulf %53, %54 : vector<16x1xf32>
    %cst_25 = arith.constant 0.707089126 : f32
    %56 = vector.broadcast %cst_25 : f32 to vector<16x1xf32>
    %57 = arith.addf %56, %55 : vector<16x1xf32>
    %cst_26 = arith.constant 2.000000e+00 : f32
    %58 = vector.broadcast %cst_26 : f32 to vector<16x1xf32>
    %59 = arith.cmpf oge, %5, %58 : vector<16x1xf32>
    %60 = arith.select %59, %57, %51 : vector<16x1xi1>, vector<16x1xf32>
    %cst_27 = arith.constant 6.400000e+01 : f32
    %61 = vector.broadcast %cst_27 : f32 to vector<16x1xf32>
    %62 = arith.subf %5, %61 : vector<16x1xf32>
    %cst_28 = arith.constant -9.76561568E-5 : f32
    %63 = vector.broadcast %cst_28 : f32 to vector<16x1xf32>
    %64 = arith.mulf %62, %63 : vector<16x1xf32>
    %cst_29 = arith.constant 0.124999911 : f32
    %65 = vector.broadcast %cst_29 : f32 to vector<16x1xf32>
    %66 = arith.addf %65, %64 : vector<16x1xf32>
    %cst_30 = arith.constant 6.400000e+01 : f32
    %67 = vector.broadcast %cst_30 : f32 to vector<16x1xf32>
    %68 = arith.cmpf oge, %5, %67 : vector<16x1xf32>
    %69 = arith.select %68, %66, %60 : vector<16x1xi1>, vector<16x1xf32>
    %cst_31 = arith.constant 1.024000e+03 : f32
    %70 = vector.broadcast %cst_31 : f32 to vector<16x1xf32>
    %71 = arith.subf %5, %70 : vector<16x1xf32>
    %cst_32 = arith.constant -1.05600884E-6 : f32
    %72 = vector.broadcast %cst_32 : f32 to vector<16x1xf32>
    %73 = arith.mulf %71, %72 : vector<16x1xf32>
    %cst_33 = arith.constant 3.125000e-02 : f32
    %74 = vector.broadcast %cst_33 : f32 to vector<16x1xf32>
    %75 = arith.addf %74, %73 : vector<16x1xf32>
    %cst_34 = arith.constant 1.024000e+03 : f32
    %76 = vector.broadcast %cst_34 : f32 to vector<16x1xf32>
    %77 = arith.cmpf oge, %5, %76 : vector<16x1xf32>
    %78 = arith.select %77, %75, %69 : vector<16x1xi1>, vector<16x1xf32>
    %cst_35 = arith.constant 2.457600e+04 : f32
    %79 = vector.broadcast %cst_35 : f32 to vector<16x1xf32>
    %80 = arith.cmpf oge, %5, %79 : vector<16x1xf32>
    %cst_36 = arith.constant 0.0063788793 : f32
    %81 = vector.broadcast %cst_36 : f32 to vector<16x1xf32>
    %82 = arith.select %80, %81, %78 : vector<16x1xi1>, vector<16x1xf32>
    %83 = vector.broadcast %82 : vector<16x1xf32> to vector<16x256xf32>
    %84 = arith.mulf %0, %83 : vector<16x256xf32>
    %c0_37 = arith.constant 0 : index
    %c0_38 = arith.constant 0 : index
    %85 = vector.load %arg2[%c0_37, %c0_38] : memref<1x256xf32, #tpu.memory_space<vmem>>, vector<1x256xf32>
    %86 = vector.broadcast %85 : vector<1x256xf32> to vector<16x256xf32>
    %87 = arith.mulf %84, %86 : vector<16x256xf32>
    %c0_39 = arith.constant 0 : index
    %c0_40 = arith.constant 0 : index
    %88 = vector.load %arg3[%c0_39, %c0_40] : memref<16x256xf32, #tpu.memory_space<vmem>>, vector<16x256xf32>
    tpu.vector_store %arg3[%c0_39, %c0_40], %87 {strides = array<i32>} : memref<16x256xf32, #tpu.memory_space<vmem>>, vector<16x256xf32>,
    return
  }
  func.func @transform_0(%arg0: i32) -> (i32, i32) {
    %c0_i32 = arith.constant 0 : i32
    %c0_i32_0 = arith.constant 0 : i32
    return %arg0, %c0_i32 : i32, i32
  }
  func.func @transform_1(%arg0: i32) -> (i32, i32) {
    %c0_i32 = arith.constant 0 : i32
    %c0_i32_0 = arith.constant 0 : i32
    %c0_i32_1 = arith.constant 0 : i32
    return %c0_i32, %c0_i32_0 : i32, i32
  }
  func.func @transform_2(%arg0: i32) -> (i32, i32) {
    %c0_i32 = arith.constant 0 : i32
    %c0_i32_0 = arith.constant 0 : i32
    return %arg0, %c0_i32 : i32, i32
  }
}

</mosaic_0001>

<llo_original>
// kernel: _run.1
$region0: #{_run.1}
  #allocation0 [shape = 'u32[]', space=smem, size = 0x4, offset = 0x4, fixed_abs, tag = 'smem constant byte address 0x4 - core index']
  #allocation1 [shape = 'u32[144,128]{1,0:T(1,128)}', space=vmem, size = 0x12000, scoped, tag = 'internal scratch']
  %s0 = inlined_call_operand.hbm [shape: f32[10,256], index: 0, kind: input, shape index: {}]
  %s1 = inlined_call_operand.hbm [shape: f32[1,256], index: 1, kind: input, shape index: {}]
  %s2 = inlined_call_operand.hbm [shape: f32[10,256], index: 2, kind: output, shape index: {}]
  %s3 = sld [smem:[#allocation0]]
  $region26: #{_run.1} parent=0
    _
  %s5 = ssub.s32 1, %s3
  %s6 = scalar_select 0, %s5, %s3
  $region1: #{_run.1} parent=0
    #allocation2 [shape = 'u8[16384]{0}', space=vmem, size = 0x4000, scoped, tag = 'input window, operand 0, single buffered']
    #allocation3 [shape = 's32[1]{0}', space=sflag, size = 0x4, scoped, tag = 'scoped memory for _run.1']
    #allocation4 [shape = 's32[1]{0}', space=sflag, size = 0x4, scoped, tag = 'scoped memory for _run.1']
    #allocation5 [shape = 'u8[1024]{0}', space=vmem, size = 0x400, scoped, tag = 'input window, operand 1, single buffered']
    #allocation6 [shape = 's32[1]{0}', space=sflag, size = 0x4, scoped, tag = 'scoped memory for _run.1']
    #allocation7 [shape = 'u8[16384]{0}', space=vmem, size = 0x4000, scoped, tag = 'output window, operand 0, single buffered']
    %7 = vsyncpa [#allocation3], 0
    %8 = vsyncpa [#allocation6], 0
    %9 = vsyncpa [#allocation4], 0
    // Predicated region
    $region2: #{_run.1} parent=1 // pred_check
      _
    $region3: #{_run.1} parent=1 // pred_check_branch
      %11 = sbr.rel (0) target = $region5
    $region4: #{_run.1} parent=1 // pred_region
      %s13 = ssub.s32 512, 512
      %14 = vsyncadd [#allocation3], %s13
      %s15 = sshll.u32 [#allocation2], 4
      %s16 = int_to_ptr.vmem [resolvable:$true] %s15
      %21 = dma.hbm_to_vmem [thread:$0]  %s0, 512, %s16, [#allocation3], 256, 256, 16
    $region5: #{_run.1} parent=1 // pred_fallthru
      _
    // Predicated region
    $region6: #{_run.1} parent=1 // pred_check
      _
    $region7: #{_run.1} parent=1 // pred_check_branch
      %23 = sbr.rel (0) target = $region9
    $region8: #{_run.1} parent=1 // pred_region
      %s25 = ssub.s32 32, 32
      %26 = vsyncadd [#allocation6], %s25
      %s28 = sshll.u32 [#allocation5], 4
      %s29 = int_to_ptr.vmem [resolvable:$true] %s28
      %31 = dma.hbm_to_vmem [thread:$0]  %s1, 32, %s29, [#allocation6]
    $region9: #{_run.1} parent=1 // pred_fallthru
      _
    // Predicated region
    $region10: #{_run.1} parent=1 // pred_check
      _
    $region11: #{_run.1} parent=1 // pred_check_branch
      %33 = sbr.rel (0) target = $region13
    $region12: #{_run.1} parent=1 // pred_region
      %34 = dma.done [#allocation3], 512
    $region13: #{_run.1} parent=1 // pred_fallthru
      _
    // Predicated region
    $region14: #{_run.1} parent=1 // pred_check
      _
    $region15: #{_run.1} parent=1 // pred_check_branch
      %36 = sbr.rel (0) target = $region17
    $region16: #{_run.1} parent=1 // pred_region
      %37 = dma.done [#allocation6], 32
    $region17: #{_run.1} parent=1 // pred_fallthru
      _
    %v38 = vld [vmem:[#allocation2] sm:$0xff]
    %v39 = vld [vmem:[#allocation2 + $0x8] sm:$0xff]
    %v40 = vld [vmem:[#allocation2 + $0x10] sm:$0xff]
    %v41 = vld [vmem:[#allocation2 + $0x18] sm:$0xff]
    %v42 = vmul.f32 %v38, %v38
    %v43 = vmul.f32 %v39, %v39
    %v44 = vmul.f32 %v40, %v40
    %v45 = vmul.f32 %v41, %v41
    %v46 = vadd.f32 %v42, %v43
    %47 = vadd.xlane.f32.xlu0 %v46
    %v48 = vpop.xlane.xlu0 %47
    %v49 = vadd.f32 %v44, %v45
    %50 = vadd.xlane.f32.xlu0 %v49
    %v51 = vpop.xlane.xlu0 %50
    %v52 = vmul.f32 %v48, 0.00390625
    %v53 = vmul.f32 %v51, 0.00390625
    %v54 = vmul.f32 %v52, -48272.74
    %v55 = vmul.f32 %v53, -48272.74
    %v56 = vadd.f32 %v54, 100.0
    %v57 = vadd.f32 %v55, 100.0
    %vm58 = vcmp.ge.f32.partialorder %v52, 0.0
    %vm59 = vcmp.ge.f32.partialorder %v53, 0.0
    %v60 = vsel %vm58, %v56, 0.0
    %v61 = vsel %vm59, %v57, 0.0
    %v62 = vsub.f32 %v52, 0.0015625
    %v63 = vsub.f32 %v53, 0.0015625
    %v64 = vmul.f32 %v62, -1427.6973
    %v65 = vmul.f32 %v63, -1427.6973
    %v66 = vadd.f32 %v64, 24.525574
    %v67 = vadd.f32 %v65, 24.525574
    %vm68 = vcmp.ge.f32.partialorder %v52, 0.0015625
    %vm69 = vcmp.ge.f32.partialorder %v53, 0.0015625
    %v70 = vsel %vm68, %v66, %v60
    %v71 = vsel %vm69, %v67, %v61
    %v72 = vsub.f32 %v52, 0.0125
    %v73 = vsub.f32 %v53, 0.0125
    %v74 = vmul.f32 %v72, -15.373579
    %v75 = vmul.f32 %v73, -15.373579
    %v76 = vadd.f32 %v74, 8.908708
    %v77 = vadd.f32 %v75, 8.908708
    %vm78 = vcmp.ge.f32.partialorder %v52, 0.0125
    %vm79 = vcmp.ge.f32.partialorder %v53, 0.0125
    %v80 = vsel %vm78, %v76, %v70
    %v81 = vsel %vm79, %v77, %v71
    %v82 = vsub.f32 %v52, 0.5
    %v83 = vsub.f32 %v53, 0.5
    %v84 = vmul.f32 %v82, -0.82824254
    %v85 = vmul.f32 %v83, -0.82824254
    %v86 = vadd.f32 %v84, 1.4140722
    %v87 = vadd.f32 %v85, 1.4140722
    %vm88 = vcmp.ge.f32.partialorder %v52, 0.5
    %vm89 = vcmp.ge.f32.partialorder %v53, 0.5
    %v90 = vsel %vm88, %v86, %v80
    %v91 = vsel %vm89, %v87, %v81
    %v92 = vsub.f32 %v52, 1.0
    %v93 = vsub.f32 %v53, 1.0
    %v94 = vmul.f32 %v92, -0.29286066
    %v95 = vmul.f32 %v93, -0.29286066
    %v96 = vadd.f32 %v94, 0.99995005
    %v97 = vadd.f32 %v95, 0.99995005
    %vm98 = vcmp.ge.f32.partialorder %v52, 1.0
    %vm99 = vcmp.ge.f32.partialorder %v53, 1.0
    %v100 = vsel %vm98, %v96, %v90
    %v101 = vsel %vm99, %v97, %v91
    %v102 = vsub.f32 %v52, 2.0
    %v103 = vsub.f32 %v53, 2.0
    %v104 = vmul.f32 %v102, -0.009388535
    %v105 = vmul.f32 %v103, -0.009388535
    %v106 = vadd.f32 %v104, 0.7070891
    %v107 = vadd.f32 %v105, 0.7070891
    %vm108 = vcmp.ge.f32.partialorder %v52, 2.0
    %vm109 = vcmp.ge.f32.partialorder %v53, 2.0
    %v110 = vsel %vm108, %v106, %v100
    %v111 = vsel %vm109, %v107, %v101
    %v112 = vsub.f32 %v52, 64.0
    %v113 = vsub.f32 %v53, 64.0
    %v114 = vmul.f32 %v112, -9.765616e-05
    %v115 = vmul.f32 %v113, -9.765616e-05
    %v116 = vadd.f32 %v114, 0.12499991
    %v117 = vadd.f32 %v115, 0.12499991
    %vm118 = vcmp.ge.f32.partialorder %v52, 64.0
    %vm119 = vcmp.ge.f32.partialorder %v53, 64.0
    %v120 = vsel %vm118, %v116, %v110
    %v121 = vsel %vm119, %v117, %v111
    %v122 = vsub.f32 %v52, 1024.0
    %v123 = vsub.f32 %v53, 1024.0
    %v124 = vmul.f32 %v122, -1.0560088e-06
    %v125 = vmul.f32 %v123, -1.0560088e-06
    %v126 = vadd.f32 %v124, 0.03125
    %v127 = vadd.f32 %v125, 0.03125
    %vm128 = vcmp.ge.f32.partialorder %v52, 1024.0
    %vm129 = vcmp.ge.f32.partialorder %v53, 1024.0
    %v130 = vsel %vm128, %v126, %v120
    %v131 = vsel %vm129, %v127, %v121
    %vm132 = vcmp.ge.f32.partialorder %v52, 24576.0
    %vm133 = vcmp.ge.f32.partialorder %v53, 24576.0
    %v134 = vsel %vm132, 0.0063788793, %v130
    %v135 = vsel %vm133, 0.0063788793, %v131
    %v136 = vmul.f32 %v38, %v134
    %v137 = vmul.f32 %v39, %v134
    %v138 = vmul.f32 %v40, %v135
    %v139 = vmul.f32 %v41, %v135
    %v140 = vld [vmem:[#allocation5] sm:$0x3]
    %v142 = vlaneseq
    %v143 = vshrl.u32 %v142, 7
    %v144 = vsub.s32 0, %v143
    %v145 = vrot.slane %v140, %v144
    %v146 = vlaneseq
    %v147 = vshrl.u32 %v146, 7
    %v148 = vsub.s32 1, %v147
    %v149 = vrot.slane %v140, %v148
    %v152 = vmul.f32 %v136, %v145
    %v153 = vmul.f32 %v137, %v149
    %v154 = vmul.f32 %v138, %v145
    %v155 = vmul.f32 %v139, %v149
    %156 = vst [vmem:[#allocation7] sm:$0xff] %v152
    %157 = vst [vmem:[#allocation7 + $0x8] sm:$0xff] %v153
    %158 = vst [vmem:[#allocation7 + $0x10] sm:$0xff] %v154
    %159 = vst [vmem:[#allocation7 + $0x18] sm:$0xff] %v155
    // Predicated region
    $region18: #{_run.1} parent=1 // pred_check
      _
    $region19: #{_run.1} parent=1 // pred_check_branch
      %161 = sbr.rel (0) target = $region21
    $region20: #{_run.1} parent=1 // pred_region
      %s163 = ssub.s32 512, 512
      %164 = vsyncadd [#allocation4], %s163
      %s165 = sshll.u32 [#allocation7], 4
      %s166 = int_to_ptr.vmem [resolvable:$true] %s165
      %171 = dma.vmem_to_hbm [thread:$0]  %s166, 512, %s2, [#allocation4], 256, 256, 16
    $region21: #{_run.1} parent=1 // pred_fallthru
      _
    // Predicated region
    $region22: #{_run.1} parent=1 // pred_check
      _
    $region23: #{_run.1} parent=1 // pred_check_branch
      %173 = sbr.rel (0) target = $region25
    $region24: #{_run.1} parent=1 // pred_region
      %174 = dma.done [#allocation4], 512
    $region25: #{_run.1} parent=1 // pred_fallthru
      _
    %175 = vsyncpa [#allocation3], 1
    %176 = vsyncpa [#allocation6], 1
    %177 = vsyncpa [#allocation4], 1

</llo_original>
